<compile_context>
chip_gen: v7x
topology: tpu7x:2x2x1
jax: 0.10.0
libtpu: 0.0.40
codegen_flags: <defaults>
</compile_context>

<pallas_src>
import math
from functools import lru_cache

import jax
import jax.numpy as jnp
import numpy as np
from jax.experimental import pallas as pl
from jax.experimental.pallas import tpu as pltpu


def _round_up(v, m):
    return ((v + m - 1) // m) * m


def _tpu_kind():
    try:
        return jax.devices()[0].device_kind.lower()
    except Exception:
        return ""


@lru_cache(maxsize=8)
def _dft_bases(n, n_pad, nf_pad):
    """Batch-shared real-DFT bases (bf16, lane-padded); fftshift folded into the inverse."""
    nf = n // 2 + 1

    # Forward: X[k] = sum_t x[t] * (cos - i sin)(2*pi*k*t/n).   F = [cos | -sin].
    t = np.arange(n, dtype=np.int64)[:, None]
    k = np.arange(nf, dtype=np.int64)[None, :]
    ang_f = (2.0 * np.pi / n) * ((t * k) % n)
    F = np.zeros((n_pad, 2 * nf_pad), dtype=np.float32)
    F[:n, :nf] = np.cos(ang_f)
    F[:n, nf_pad:nf_pad + nf] = -np.sin(ang_f)

    # Inverse real DFT with the fftshift folded in:
    #   out[j] = cc[(j - n//2) mod n]
    #          = (1/n) sum_k w_k * (Gr[k] cos(a) - Gi[k] sin(a)),
    #   a = 2*pi*k*((j - n//2) mod n)/n,   w_0 = 1, w_k = 2, w_{n/2} = 1 (n even).
    kk = np.arange(nf, dtype=np.int64)[:, None]
    jj = np.arange(n, dtype=np.int64)[None, :]
    w = np.where(kk == 0, 1.0, 2.0)
    if n % 2 == 0:
        w = np.where(kk == n // 2, 1.0, w)
    shift = (jj - n // 2) % n
    ang_i = (2.0 * np.pi / n) * ((kk * shift) % n)
    C = np.zeros((2 * nf_pad, n_pad), dtype=np.float32)
    C[:nf, :n] = (w / n) * np.cos(ang_i)
    C[nf_pad:nf_pad + nf, :n] = -(w / n) * np.sin(ang_i)

    # bf16: the MXU runs single-pass bf16 at default precision anyway, so this loses
    # no accuracy but halves basis HBM traffic and VMEM residency.
    return jnp.asarray(F, dtype=jnp.bfloat16), jnp.asarray(C, dtype=jnp.bfloat16)


def _cc_kernel(x_ref, y_ref, f_ref, c_ref, o_ref):
    # x_ref, y_ref : (TB, n_pad)        zero-padded signals (f32), TB batch rows per step
    # f_ref        : (n_pad, 2*nf_pad)  [cos | -sin] forward basis, bf16, batch-shared
    # c_ref        : (2*nf_pad, n_pad)  [Cr ; Ci] inverse basis with fftshift folded in
    # o_ref        : (TB, n_pad)        cross-correlation, zero lag at n//2
    tb = o_ref.shape[0]
    nf_pad = f_ref.shape[1] // 2

    # One fused forward matmul: the forward basis is pushed through the MXU once.
    z = jnp.concatenate([x_ref[...], y_ref[...]], axis=0).astype(jnp.bfloat16)
    zf = jnp.dot(z, f_ref[...], preferred_element_type=jnp.float32)
    xr, xi = zf[:tb, :nf_pad], zf[:tb, nf_pad:]      # tile-aligned slices (free)
    yr, yi = zf[tb:, :nf_pad], zf[tb:, nf_pad:]

    # Cross-power spectrum G = X * conj(Y)  (VPU, f32).
    gr = xr * yr + xi * yi
    gi = xi * yr - xr * yi

    # One fused inverse matmul (fftshift already baked into the basis).
    g = jnp.concatenate([gr, gi], axis=1).astype(jnp.bfloat16)
    o_ref[...] = jnp.dot(g, c_ref[...], preferred_element_type=jnp.float32)


def _cc_pallas(x_flat, y_flat):
    """x_flat (B, Lx), y_flat (B, Ly) float32 -> (B, n) fftshift'ed cross-correlation."""
    B, Lx = x_flat.shape
    Ly = y_flat.shape[-1]
    n = Lx + Ly
    nf = n // 2 + 1                      # rfft half-spectrum length

    # Lane/sublane-friendly padded sizes.
    n_pad = _round_up(n, 128)
    nf_pad = _round_up(nf, 128)

    # Generation-aware batch tile.
    kind = _tpu_kind()
    tb_cap = 256 if "v6" in kind else 128            # v6e MXU is 2x 256x256
    TB = min(tb_cap, _round_up(B, 8))
    B_pad = _round_up(B, TB)
    if ("v7" in kind or "7x" in kind) and B_pad // TB < 2 and TB > 8:
        # v7x has 2 TensorCores; keep >= 2 "parallel" grid steps so both get work.
        TB = _round_up((TB + 1) // 2, 8)
        B_pad = _round_up(B, TB)
    grid = (B_pad // TB,)

    # Zero-padded signals (pad in time to n_pad and in batch to B_pad).
    x_pad = jnp.zeros((B_pad, n_pad), jnp.float32).at[:B, :Lx].set(x_flat)
    y_pad = jnp.zeros((B_pad, n_pad), jnp.float32).at[:B, :Ly].set(y_flat)

    # Host-precomputed, cached, bf16, batch-shared DFT bases.
    f_basis, c_basis = _dft_bases(n, n_pad, nf_pad)

    # Scoped-VMEM budget from the actual block footprint (with headroom, including room
    # for the double-buffered-basis fallback).  Default scoped VMEM is only 16/32 MiB,
    # far below physical, so large n would fail or spill without raising it.
    basis_bytes = 2 * (n_pad * 2 * nf_pad) * 2 * 2             # F + C, bf16, x2 fallback
    io_bytes = (3 * TB * n_pad * 4) * 2                        # x, y, out blocks, 2 buffers
    tmp_bytes = (2 * TB * 2 * nf_pad + 6 * TB * nf_pad + 2 * TB * n_pad) * 4
    need = basis_bytes + io_bytes + tmp_bytes
    vmem_limit = int(min(64 * 2 ** 20, max(16 * 2 ** 20, need + need // 2 + (2 << 20))))

    # TODO(synk): for very large n (basis blocks above the VMEM budget, n >~ 4k on v7x
    # even in bf16), add an inner "arbitrary" grid axis over the frequency dimension
    # with a (TB, n_pad) f32 accumulator instead of keeping the bases fully resident.

    def _make_call(single_buffer_bases):
        if single_buffer_bases:
            # Constant index_map -> the block never changes; single-buffer it.
            def basis_spec(shape):
                return pl.BlockSpec(shape, lambda b: (0, 0), pipeline_mode=pl.Buffered(1))
        else:
            def basis_spec(shape):
                return pl.BlockSpec(shape, lambda b: (0, 0))
        return pl.pallas_call(
            _cc_kernel,
            out_shape=jax.ShapeDtypeStruct((B_pad, n_pad), jnp.float32),
            grid=grid,
            in_specs=[
                pl.BlockSpec((TB, n_pad), lambda b: (b, 0)),        # x rows for this step
                pl.BlockSpec((TB, n_pad), lambda b: (b, 0)),        # y rows for this step
                basis_spec((n_pad, 2 * nf_pad)),                    # forward basis (shared)
                basis_spec((2 * nf_pad, n_pad)),                    # inverse basis (shared)
            ],
            out_specs=pl.BlockSpec((TB, n_pad), lambda b: (b, 0)),
            compiler_params=pltpu.CompilerParams(
                dimension_semantics=("parallel",),
                vmem_limit_bytes=vmem_limit,
            ),
        )

    try:
        out = _make_call(True)(x_pad, y_pad, f_basis, c_basis)
    except Exception:
        # TODO(synk): drop this fallback once pl.Buffered(1) single-buffering is
        # supported on all installed jax versions.
        out = _make_call(False)(x_pad, y_pad, f_basis, c_basis)

    return out[:B, :n]


def cc_forward(x, y, sampling_rate=16000, max_tau=None, tdoa_estimate=False):
    """Equivalent of CC.forward(x, y)."""
    n = x.shape[-1] + y.shape[-1]
    bshape = jnp.broadcast_shapes(x.shape[:-1], y.shape[:-1])
    xb = jnp.broadcast_to(x, bshape + (x.shape[-1],)).reshape(-1, x.shape[-1])
    yb = jnp.broadcast_to(y, bshape + (y.shape[-1],)).reshape(-1, y.shape[-1])

    cc = _cc_pallas(xb.astype(jnp.float32), yb.astype(jnp.float32))
    cc = cc.reshape(bshape + (n,))

    if max_tau and max_tau < n / 2:      # same (max_tau=0 => no slicing) semantics as torch
        cc = cc[..., n // 2 - max_tau: n // 2 + max_tau + 1]
    if tdoa_estimate:
        return jnp.argmax(cc, axis=-1) - math.floor(cc.shape[-1] / 2)
    return cc


def cc_forward_single(x, **kwargs):
    """Equivalent of CC.forward(x) — split the size-2 dim at axis=-2."""
    x1, y1 = jnp.split(x, 2, axis=-2)
    return cc_forward(x1, y1, **kwargs)


if __name__ == "__main__":
    key = jax.random.PRNGKey(0)
    B, L = 4, 64                          # batch=4, 2 channels, 64 samples
    x = jax.random.normal(key, (B, 2, L), dtype=jnp.float32)

    out = cc_forward_single(x)            # (B, 1, 2*L)
    out = jax.block_until_ready(out)

    # Reference: same math as the torch module, via FFT.
    x1, y1 = jnp.split(x, 2, axis=-2)
    n = 2 * L
    X = jnp.fft.rfft(x1, n=n)
    Y = jnp.fft.rfft(y1, n=n)
    ref = jnp.fft.fftshift(jnp.fft.irfft(X * jnp.conj(Y), n=n), axes=-1)

    assert out.shape == (B, 1, n), out.shape
    scale = float(jnp.max(jnp.abs(ref)))
    err = float(jnp.max(jnp.abs(out - ref)))
    assert err <= 3e-2 * scale, (err, scale)

    # Exercise the max_tau slicing path as well.
    max_tau = 10
    out_tau = jax.block_until_ready(cc_forward(x1, y1, max_tau=max_tau))
    ref_tau = ref[..., n // 2 - max_tau: n // 2 + max_tau + 1]
    assert out_tau.shape == ref_tau.shape, (out_tau.shape, ref_tau.shape)
    err_tau = float(jnp.max(jnp.abs(out_tau - ref_tau)))
    assert err_tau <= 3e-2 * scale, (err_tau, scale)

    print("KERNEL_OK")
</pallas_src>

<mosaic_0001>
module attributes {stable_mosaic.version = 11 : i64} {
  func.func @_cc_kernel(%arg0: i32, %arg1: memref<8x128xf32, #tpu.memory_space<vmem>>, %arg2: memref<8x128xf32, #tpu.memory_space<vmem>>, %arg3: memref<128x256xbf16, #tpu.memory_space<vmem>>, %arg4: memref<256x128xbf16, #tpu.memory_space<vmem>>, %arg5: memref<8x128xf32, #tpu.memory_space<vmem>>) attributes {dimension_semantics = [#tpu.dimension_semantics<parallel>], iteration_bounds = array<i64: 1>, scalar_prefetch = 0 : i64, scratch_operands = 0 : i64, tpu.core_type = #tpu.core_type<tc>, window_params = [{transform_indices = @transform_0, window_bounds = array<i64: 8, 128>}, {transform_indices = @transform_1, window_bounds = array<i64: 8, 128>}, {pipeline_mode = #tpu.pipeline_mode<synchronous>, transform_indices = @transform_2, window_bounds = array<i64: 128, 256>}, {pipeline_mode = #tpu.pipeline_mode<synchronous>, transform_indices = @transform_3, window_bounds = array<i64: 256, 128>}, {transform_indices = @transform_4, window_bounds = array<i64: 8, 128>}]} {
    %c0 = arith.constant 0 : index
    %c0_0 = arith.constant 0 : index
    %0 = vector.load %arg1[%c0, %c0_0] : memref<8x128xf32, #tpu.memory_space<vmem>>, vector<8x128xf32>
    %c0_1 = arith.constant 0 : index
    %c0_2 = arith.constant 0 : index
    %1 = vector.load %arg2[%c0_1, %c0_2] : memref<8x128xf32, #tpu.memory_space<vmem>>, vector<8x128xf32>
    %2 = tpu.concatenate %0, %1 in 0 : vector<8x128xf32>, vector<8x128xf32> -> vector<16x128xf32>
    %3 = arith.truncf %2 : vector<16x128xf32> to vector<16x128xbf16>
    %c0_3 = arith.constant 0 : index
    %c0_4 = arith.constant 0 : index
    %4 = vector.load %arg3[%c0_3, %c0_4] : memref<128x256xbf16, #tpu.memory_space<vmem>>, vector<128x256xbf16>
    %cst = arith.constant dense<0.000000e+00> : vector<16x256xf32>
    %5 = tpu.matmul %3, %4, %cst {dimension_numbers = #tpu.dot_dimension_numbers<[1], [0], [0], [1], [0, 0, 1, 1], [], []>} : vector<16x128xbf16>, vector<128x256xbf16>, vector<16x256xf32> -> vector<16x256xf32>
    %6 = vector.extract_strided_slice %5 {offsets = [0, 0], sizes = [8, 128], strides = [1, 1]} : vector<16x256xf32> to vector<8x128xf32>
    %7 = vector.extract_strided_slice %5 {offsets = [0, 128], sizes = [8, 128], strides = [1, 1]} : vector<16x256xf32> to vector<8x128xf32>
    %8 = vector.extract_strided_slice %5 {offsets = [8, 0], sizes = [8, 128], strides = [1, 1]} : vector<16x256xf32> to vector<8x128xf32>
    %9 = vector.extract_strided_slice %5 {offsets = [8, 128], sizes = [8, 128], strides = [1, 1]} : vector<16x256xf32> to vector<8x128xf32>
    %10 = arith.mulf %6, %8 : vector<8x128xf32>
    %11 = arith.mulf %7, %9 : vector<8x128xf32>
    %12 = arith.addf %10, %11 : vector<8x128xf32>
    %13 = arith.mulf %7, %8 : vector<8x128xf32>
    %14 = arith.mulf %6, %9 : vector<8x128xf32>
    %15 = arith.subf %13, %14 : vector<8x128xf32>
    %16 = tpu.concatenate %12, %15 in 1 : vector<8x128xf32>, vector<8x128xf32> -> vector<8x256xf32>
    %17 = arith.truncf %16 : vector<8x256xf32> to vector<8x256xbf16>
    %c0_5 = arith.constant 0 : index
    %c0_6 = arith.constant 0 : index
    %18 = vector.load %arg4[%c0_5, %c0_6] : memref<256x128xbf16, #tpu.memory_space<vmem>>, vector<256x128xbf16>
    %cst_7 = arith.constant dense<0.000000e+00> : vector<8x128xf32>
    %19 = tpu.matmul %17, %18, %cst_7 {dimension_numbers = #tpu.dot_dimension_numbers<[1], [0], [0], [1], [0, 0, 1, 1], [], []>} : vector<8x256xbf16>, vector<256x128xbf16>, vector<8x128xf32> -> vector<8x128xf32>
    %c0_8 = arith.constant 0 : index
    %c0_9 = arith.constant 0 : index
    %20 = vector.load %arg5[%c0_8, %c0_9] : memref<8x128xf32, #tpu.memory_space<vmem>>, vector<8x128xf32>
    tpu.vector_store %arg5[%c0_8, %c0_9], %19 {strides = array<i32>} : memref<8x128xf32, #tpu.memory_space<vmem>>, vector<8x128xf32>,
    return
  }
  func.func @transform_0(%arg0: i32) -> (i32, i32) {
    %c0_i32 = arith.constant 0 : i32
    %c0_i32_0 = arith.constant 0 : i32
    return %arg0, %c0_i32 : i32, i32
  }
  func.func @transform_1(%arg0: i32) -> (i32, i32) {
    %c0_i32 = arith.constant 0 : i32
    %c0_i32_0 = arith.constant 0 : i32
    return %arg0, %c0_i32 : i32, i32
  }
  func.func @transform_2(%arg0: i32) -> (i32, i32) {
    %c0_i32 = arith.constant 0 : i32
    %c0_i32_0 = arith.constant 0 : i32
    %c0_i32_1 = arith.constant 0 : i32
    return %c0_i32, %c0_i32_0 : i32, i32
  }
  func.func @transform_3(%arg0: i32) -> (i32, i32) {
    %c0_i32 = arith.constant 0 : i32
    %c0_i32_0 = arith.constant 0 : i32
    %c0_i32_1 = arith.constant 0 : i32
    return %c0_i32, %c0_i32_0 : i32, i32
  }
  func.func @transform_4(%arg0: i32) -> (i32, i32) {
    %c0_i32 = arith.constant 0 : i32
    %c0_i32_0 = arith.constant 0 : i32
    return %arg0, %c0_i32 : i32, i32
  }
}

module attributes {stable_mosaic.version = 11 : i64} {
  func.func @_cc_kernel(%arg0: i32, %arg1: memref<8x128xf32, #tpu.memory_space<vmem>>, %arg2: memref<8x128xf32, #tpu.memory_space<vmem>>, %arg3: memref<128x256xbf16, #tpu.memory_space<vmem>>, %arg4: memref<256x128xbf16, #tpu.memory_space<vmem>>, %arg5: memref<8x128xf32, #tpu.memory_space<vmem>>) attributes {dimension_semantics = [#tpu.dimension_semantics<parallel>], iteration_bounds = array<i64: 1>, scalar_prefetch = 0 : i64, scratch_operands = 0 : i64, tpu.core_type = #tpu.core_type<tc>, window_params = [{transform_indices = @transform_0, window_bounds = array<i64: 8, 128>}, {transform_indices = @transform_1, window_bounds = array<i64: 8, 128>}, {pipeline_mode = #tpu.pipeline_mode<synchronous>, transform_indices = @transform_2, window_bounds = array<i64: 128, 256>}, {pipeline_mode = #tpu.pipeline_mode<synchronous>, transform_indices = @transform_3, window_bounds = array<i64: 256, 128>}, {transform_indices = @transform_4, window_bounds = array<i64: 8, 128>}]} {
    %c0 = arith.constant 0 : index
    %c0_0 = arith.constant 0 : index
    %0 = vector.load %arg1[%c0, %c0_0] : memref<8x128xf32, #tpu.memory_space<vmem>>, vector<8x128xf32>
    %c0_1 = arith.constant 0 : index
    %c0_2 = arith.constant 0 : index
    %1 = vector.load %arg2[%c0_1, %c0_2] : memref<8x128xf32, #tpu.memory_space<vmem>>, vector<8x128xf32>
    %2 = tpu.concatenate %0, %1 in 0 : vector<8x128xf32>, vector<8x128xf32> -> vector<16x128xf32>
    %3 = arith.truncf %2 : vector<16x128xf32> to vector<16x128xbf16>
    %c0_3 = arith.constant 0 : index
    %c0_4 = arith.constant 0 : index
    %4 = vector.load %arg3[%c0_3, %c0_4] : memref<128x256xbf16, #tpu.memory_space<vmem>>, vector<128x256xbf16>
    %cst = arith.constant dense<0.000000e+00> : vector<16x256xf32>
    %5 = tpu.matmul %3, %4, %cst {dimension_numbers = #tpu.dot_dimension_numbers<[1], [0], [0], [1], [0, 0, 1, 1], [], []>} : vector<16x128xbf16>, vector<128x256xbf16>, vector<16x256xf32> -> vector<16x256xf32>
    %6 = vector.extract_strided_slice %5 {offsets = [0, 0], sizes = [8, 128], strides = [1, 1]} : vector<16x256xf32> to vector<8x128xf32>
    %7 = vector.extract_strided_slice %5 {offsets = [0, 128], sizes = [8, 128], strides = [1, 1]} : vector<16x256xf32> to vector<8x128xf32>
    %8 = vector.extract_strided_slice %5 {offsets = [8, 0], sizes = [8, 128], strides = [1, 1]} : vector<16x256xf32> to vector<8x128xf32>
    %9 = vector.extract_strided_slice %5 {offsets = [8, 128], sizes = [8, 128], strides = [1, 1]} : vector<16x256xf32> to vector<8x128xf32>
    %10 = arith.mulf %6, %8 : vector<8x128xf32>
    %11 = arith.mulf %7, %9 : vector<8x128xf32>
    %12 = arith.addf %10, %11 : vector<8x128xf32>
    %13 = arith.mulf %7, %8 : vector<8x128xf32>
    %14 = arith.mulf %6, %9 : vector<8x128xf32>
    %15 = arith.subf %13, %14 : vector<8x128xf32>
    %16 = tpu.concatenate %12, %15 in 1 : vector<8x128xf32>, vector<8x128xf32> -> vector<8x256xf32>
    %17 = arith.truncf %16 : vector<8x256xf32> to vector<8x256xbf16>
    %c0_5 = arith.constant 0 : index
    %c0_6 = arith.constant 0 : index
    %18 = vector.load %arg4[%c0_5, %c0_6] : memref<256x128xbf16, #tpu.memory_space<vmem>>, vector<256x128xbf16>
    %cst_7 = arith.constant dense<0.000000e+00> : vector<8x128xf32>
    %19 = tpu.matmul %17, %18, %cst_7 {dimension_numbers = #tpu.dot_dimension_numbers<[1], [0], [0], [1], [0, 0, 1, 1], [], []>} : vector<8x256xbf16>, vector<256x128xbf16>, vector<8x128xf32> -> vector<8x128xf32>
    %c0_8 = arith.constant 0 : index
    %c0_9 = arith.constant 0 : index
    %20 = vector.load %arg5[%c0_8, %c0_9] : memref<8x128xf32, #tpu.memory_space<vmem>>, vector<8x128xf32>
    tpu.vector_store %arg5[%c0_8, %c0_9], %19 {strides = array<i32>} : memref<8x128xf32, #tpu.memory_space<vmem>>, vector<8x128xf32>,
    return
  }
  func.func @transform_0(%arg0: i32) -> (i32, i32) {
    %c0_i32 = arith.constant 0 : i32
    %c0_i32_0 = arith.constant 0 : i32
    return %arg0, %c0_i32 : i32, i32
  }
  func.func @transform_1(%arg0: i32) -> (i32, i32) {
    %c0_i32 = arith.constant 0 : i32
    %c0_i32_0 = arith.constant 0 : i32
    return %arg0, %c0_i32 : i32, i32
  }
  func.func @transform_2(%arg0: i32) -> (i32, i32) {
    %c0_i32 = arith.constant 0 : i32
    %c0_i32_0 = arith.constant 0 : i32
    %c0_i32_1 = arith.constant 0 : i32
    return %c0_i32, %c0_i32_0 : i32, i32
  }
  func.func @transform_3(%arg0: i32) -> (i32, i32) {
    %c0_i32 = arith.constant 0 : i32
    %c0_i32_0 = arith.constant 0 : i32
    %c0_i32_1 = arith.constant 0 : i32
    return %c0_i32, %c0_i32_0 : i32, i32
  }
  func.func @transform_4(%arg0: i32) -> (i32, i32) {
    %c0_i32 = arith.constant 0 : i32
    %c0_i32_0 = arith.constant 0 : i32
    return %arg0, %c0_i32 : i32, i32
  }
}

</mosaic_0001>

<llo_original>
// kernel: tpu_custom_call.1
$region0: #{tpu_custom_call.1}
  #allocation0 [shape = 'u32[]', space=smem, size = 0x4, offset = 0x4, fixed_abs, tag = 'smem constant byte address 0x4 - core index']
  #allocation1 [shape = 'u32[144,128]{1,0:T(1,128)}', space=vmem, size = 0x12000, scoped, tag = 'internal scratch']
  %s0 = inlined_call_operand.hbm [shape: f32[8,128], index: 0, kind: input, shape index: {}]
  %s1 = inlined_call_operand.hbm [shape: f32[8,128], index: 1, kind: input, shape index: {}]
  %s2 = inlined_call_operand.hbm [shape: bf16[128,256], index: 2, kind: input, shape index: {}]
  %s3 = inlined_call_operand.hbm [shape: bf16[256,128], index: 3, kind: input, shape index: {}]
  %s4 = inlined_call_operand.hbm [shape: f32[8,128], index: 4, kind: output, shape index: {}]
  %s5 = sld [smem:[#allocation0]]
  $region42: #{tpu_custom_call.1} parent=0
    _
  %s7 = ssub.s32 1, %s5
  %s8 = scalar_select 0, %s7, %s5
  $region1: #{tpu_custom_call.1} parent=0
    #allocation2 [shape = 'u8[4096]{0}', space=vmem, size = 0x1000, scoped, tag = 'input window, operand 0, single buffered']
    #allocation3 [shape = 's32[1]{0}', space=sflag, size = 0x4, scoped, tag = 'scoped memory for tpu_custom_call.1']
    #allocation4 [shape = 's32[1]{0}', space=sflag, size = 0x4, scoped, tag = 'scoped memory for tpu_custom_call.1']
    #allocation5 [shape = 'u8[4096]{0}', space=vmem, size = 0x1000, scoped, tag = 'input window, operand 1, single buffered']
    #allocation6 [shape = 's32[1]{0}', space=sflag, size = 0x4, scoped, tag = 'scoped memory for tpu_custom_call.1']
    #allocation7 [shape = 'u8[65536]{0}', space=vmem, size = 0x10000, scoped, tag = 'input window, operand 2, single buffered']
    #allocation8 [shape = 'u8[65536]{0}', space=vmem, size = 0x10000, scoped, tag = 'input window, operand 3, single buffered']
    #allocation9 [shape = 's32[1]{0}', space=sflag, size = 0x4, scoped, tag = 'scoped memory for tpu_custom_call.1']
    #allocation10 [shape = 'u8[4096]{0}', space=vmem, size = 0x1000, scoped, tag = 'output window, operand 0, single buffered']
    %9 = vsyncpa [#allocation3], 0
    %10 = vsyncpa [#allocation6], 0
    %11 = vsyncpa [#allocation9], 0
    %12 = vsyncpa [#allocation4], 0
    // Predicated region
    $region2: #{tpu_custom_call.1} parent=1 // pred_check
      _
    $region3: #{tpu_custom_call.1} parent=1 // pred_check_branch
      %14 = sbr.rel (0) target = $region5
    $region4: #{tpu_custom_call.1} parent=1 // pred_region
      %s16 = ssub.s32 128, 128
      %17 = vsyncadd [#allocation3], %s16
      %s19 = sshll.u32 [#allocation2], 4
      %s20 = int_to_ptr.vmem [resolvable:$true] %s19
      %22 = dma.hbm_to_vmem [thread:$0]  %s0, 128, %s20, [#allocation3]
    $region5: #{tpu_custom_call.1} parent=1 // pred_fallthru
      _
    // Predicated region
    $region6: #{tpu_custom_call.1} parent=1 // pred_check
      _
    $region7: #{tpu_custom_call.1} parent=1 // pred_check_branch
      %24 = sbr.rel (0) target = $region9
    $region8: #{tpu_custom_call.1} parent=1 // pred_region
      %s26 = ssub.s32 128, 128
      %27 = vsyncadd [#allocation6], %s26
      %s29 = sshll.u32 [#allocation5], 4
      %s30 = int_to_ptr.vmem [resolvable:$true] %s29
      %32 = dma.hbm_to_vmem [thread:$0]  %s1, 128, %s30, [#allocation6]
    $region9: #{tpu_custom_call.1} parent=1 // pred_fallthru
      _
    // Predicated region
    $region10: #{tpu_custom_call.1} parent=1 // pred_check
      _
    $region11: #{tpu_custom_call.1} parent=1 // pred_check_branch
      %34 = sbr.rel (0) target = $region13
    $region12: #{tpu_custom_call.1} parent=1 // pred_region
      %s36 = ssub.s32 2048, 2048
      %37 = vsyncadd [#allocation6], %s36
      %s38 = sshll.u32 [#allocation7], 4
      %s39 = int_to_ptr.vmem [resolvable:$true] %s38
      %44 = dma.hbm_to_vmem [thread:$0]  %s2, 2048, %s39, [#allocation6], 128, 128, 8
    $region13: #{tpu_custom_call.1} parent=1 // pred_fallthru
      _
    // Predicated region
    $region14: #{tpu_custom_call.1} parent=1 // pred_check
      _
    $region15: #{tpu_custom_call.1} parent=1 // pred_check_branch
      %46 = sbr.rel (0) target = $region17
    $region16: #{tpu_custom_call.1} parent=1 // pred_region
      %s48 = ssub.s32 2048, 2048
      %49 = vsyncadd [#allocation9], %s48
      %s50 = sshll.u32 [#allocation8], 4
      %s51 = int_to_ptr.vmem [resolvable:$true] %s50
      %56 = dma.hbm_to_vmem [thread:$0]  %s3, 2048, %s51, [#allocation9], 64, 64, 4
    $region17: #{tpu_custom_call.1} parent=1 // pred_fallthru
      _
    // Predicated region
    $region18: #{tpu_custom_call.1} parent=1 // pred_check
      _
    $region19: #{tpu_custom_call.1} parent=1 // pred_check_branch
      %58 = sbr.rel (0) target = $region21
    $region20: #{tpu_custom_call.1} parent=1 // pred_region
      %59 = dma.done [#allocation3], 128
    $region21: #{tpu_custom_call.1} parent=1 // pred_fallthru
      _
    // Predicated region
    $region22: #{tpu_custom_call.1} parent=1 // pred_check
      _
    $region23: #{tpu_custom_call.1} parent=1 // pred_check_branch
      %61 = sbr.rel (0) target = $region25
    $region24: #{tpu_custom_call.1} parent=1 // pred_region
      %62 = dma.done [#allocation6], 128
    $region25: #{tpu_custom_call.1} parent=1 // pred_fallthru
      _
    // Predicated region
    $region26: #{tpu_custom_call.1} parent=1 // pred_check
      _
    $region27: #{tpu_custom_call.1} parent=1 // pred_check_branch
      %64 = sbr.rel (0) target = $region29
    $region28: #{tpu_custom_call.1} parent=1 // pred_region
      %65 = dma.done [#allocation6], 2048
    $region29: #{tpu_custom_call.1} parent=1 // pred_fallthru
      _
    // Predicated region
    $region30: #{tpu_custom_call.1} parent=1 // pred_check
      _
    $region31: #{tpu_custom_call.1} parent=1 // pred_check_branch
      %67 = sbr.rel (0) target = $region33
    $region32: #{tpu_custom_call.1} parent=1 // pred_region
      %68 = dma.done [#allocation9], 2048
    $region33: #{tpu_custom_call.1} parent=1 // pred_fallthru
      _
    %v70 = vld [vmem:[#allocation2] sm:$0xff]
    %v71 = vld [vmem:[#allocation5] sm:$0xff]
    %v72 = vpack.c.bf16 %v71, %v70
    %v73 = vld [vmem:[#allocation7] sm:$0xff]
    %v74 = vld [vmem:[#allocation7 + $0x8] sm:$0xff]
    %v75 = vld [vmem:[#allocation7 + $0x10] sm:$0xff]
    %v76 = vld [vmem:[#allocation7 + $0x18] sm:$0xff]
    %v77 = vld [vmem:[#allocation7 + $0x20] sm:$0xff]
    %v78 = vld [vmem:[#allocation7 + $0x28] sm:$0xff]
    %v79 = vld [vmem:[#allocation7 + $0x30] sm:$0xff]
    %v80 = vld [vmem:[#allocation7 + $0x38] sm:$0xff]
    %v81 = vld [vmem:[#allocation7 + $0x40] sm:$0xff]
    %v82 = vld [vmem:[#allocation7 + $0x48] sm:$0xff]
    %v83 = vld [vmem:[#allocation7 + $0x50] sm:$0xff]
    %v84 = vld [vmem:[#allocation7 + $0x58] sm:$0xff]
    %v85 = vld [vmem:[#allocation7 + $0x60] sm:$0xff]
    %v86 = vld [vmem:[#allocation7 + $0x68] sm:$0xff]
    %v87 = vld [vmem:[#allocation7 + $0x70] sm:$0xff]
    %v88 = vld [vmem:[#allocation7 + $0x78] sm:$0xff]
    %v105 = vunpack.c.l.b16 %v73
    %v106 = vunpack.c.h.b16 %v73
    %v107 = vunpack.c.l.b16 %v74
    %v108 = vunpack.c.h.b16 %v74
    %v109 = vunpack.c.l.b16 %v75
    %v110 = vunpack.c.h.b16 %v75
    %v111 = vunpack.c.l.b16 %v76
    %v112 = vunpack.c.h.b16 %v76
    %v113 = vunpack.c.l.b16 %v77
    %v114 = vunpack.c.h.b16 %v77
    %v115 = vunpack.c.l.b16 %v78
    %v116 = vunpack.c.h.b16 %v78
    %v117 = vunpack.c.l.b16 %v79
    %v118 = vunpack.c.h.b16 %v79
    %v119 = vunpack.c.l.b16 %v80
    %v120 = vunpack.c.h.b16 %v80
    %v121 = vunpack.c.l.b16 %v81
    %v122 = vunpack.c.h.b16 %v81
    %v123 = vunpack.c.l.b16 %v82
    %v124 = vunpack.c.h.b16 %v82
    %v125 = vunpack.c.l.b16 %v83
    %v126 = vunpack.c.h.b16 %v83
    %v127 = vunpack.c.l.b16 %v84
    %v128 = vunpack.c.h.b16 %v84
    %v129 = vunpack.c.l.b16 %v85
    %v130 = vunpack.c.h.b16 %v85
    %v131 = vunpack.c.l.b16 %v86
    %v132 = vunpack.c.h.b16 %v86
    %v133 = vunpack.c.l.b16 %v87
    %v134 = vunpack.c.h.b16 %v87
    %v135 = vunpack.c.l.b16 %v88
    %v136 = vunpack.c.h.b16 %v88
    %v137 = vpack.c.b16 %v107, %v105
    %v138 = vpack.c.b16 %v108, %v106
    %v139 = vpack.c.b16 %v111, %v109
    %v140 = vpack.c.b16 %v112, %v110
    %v141 = vpack.c.b16 %v115, %v113
    %v142 = vpack.c.b16 %v116, %v114
    %v143 = vpack.c.b16 %v119, %v117
    %v144 = vpack.c.b16 %v120, %v118
    %v145 = vpack.c.b16 %v123, %v121
    %v146 = vpack.c.b16 %v124, %v122
    %v147 = vpack.c.b16 %v127, %v125
    %v148 = vpack.c.b16 %v128, %v126
    %v149 = vpack.c.b16 %v131, %v129
    %v150 = vpack.c.b16 %v132, %v130
    %v151 = vpack.c.b16 %v135, %v133
    %v152 = vpack.c.b16 %v136, %v134
    %169 = vmatprep.subr.bf16.mxu0 %v138
    %170 = vmatpush1.bf16.msra.mxu0 %v137
    %171 = vmatprep.subr.bf16.mxu0 %v140
    %172 = vmatpush1.bf16.msra.mxu0 %v139
    %173 = vmatprep.subr.bf16.mxu0 %v142
    %174 = vmatpush1.bf16.msra.mxu0 %v141
    %175 = vmatprep.subr.bf16.mxu0 %v144
    %176 = vmatpush1.bf16.msra.mxu0 %v143
    %177 = vmatprep.subr.bf16.mxu0 %v146
    %178 = vmatpush1.bf16.msra.mxu0 %v145
    %179 = vmatprep.subr.bf16.mxu0 %v148
    %180 = vmatpush1.bf16.msra.mxu0 %v147
    %181 = vmatprep.subr.bf16.mxu0 %v150
    %182 = vmatpush1.bf16.msra.mxu0 %v149
    %183 = vmatprep.subr.bf16.mxu0 %v152
    %184 = vmatpush1.bf16.msra.mxu0 %v151
    %185 = vmatprep.subr.bf16.mxu0 0
    %186 = vmatpush1.bf16.msra.mxu0 0
    %187 = vmatprep.subr.bf16.mxu0 0
    %188 = vmatpush1.bf16.msra.mxu0 0
    %189 = vmatprep.subr.bf16.mxu0 0
    %190 = vmatpush1.bf16.msra.mxu0 0
    %191 = vmatprep.subr.bf16.mxu0 0
    %192 = vmatpush1.bf16.msra.mxu0 0
    %193 = vmatprep.subr.bf16.mxu0 0
    %194 = vmatpush1.bf16.msra.mxu0 0
    %195 = vmatprep.subr.bf16.mxu0 0
    %196 = vmatpush1.bf16.msra.mxu0 0
    %197 = vmatprep.subr.bf16.mxu0 0
    %198 = vmatpush1.bf16.msra.mxu0 0
    %199 = vmatprep.subr.bf16.mxu0 0
    %200 = vmatpush1.bf16.msra.mxu0 0
    %201 = vmatprep.mubr.bf16.mxu0 0
    %202 = vmatmul.mubr.bf16.gmra.mrb[0].mxu0 %v72
    %v203 = vpop.f32.mrb[0].mxu0
    %v204 = vadd.f32 0.0, %v203
    %v205 = vpop.f32.mrb[0].mxu0
    %v206 = vadd.f32 0.0, %v205
    %v207 = vpop.f32.mrb[0].mxu0
    %v208 = vadd.f32 0.0, %v207
    %v209 = vpop.f32.mrb[0].mxu0
    %v210 = vadd.f32 0.0, %v209
    %211 = vdwg.mxu0
    %v212 = vmul.f32 %v204, %v208
    %v213 = vmul.f32 %v206, %v210
    %v214 = vadd.f32 %v212, %v213
    %v215 = vmul.f32 %v206, %v208
    %v216 = vmul.f32 %v204, %v210
    %v217 = vsub.f32 %v215, %v216
    %v218 = vpack.c.bf16 %v214, %v214
    %v219 = vpack.c.bf16 %v217, %v217
    %v220 = vld [vmem:[#allocation8] sm:$0xf]
    %v221 = vld [vmem:[#allocation8 + $0x4] sm:$0xf]
    %v222 = vld [vmem:[#allocation8 + $0x8] sm:$0xf]
    %v223 = vld [vmem:[#allocation8 + $0xc] sm:$0xf]
    %v224 = vld [vmem:[#allocation8 + $0x10] sm:$0xf]
    %v225 = vld [vmem:[#allocation8 + $0x14] sm:$0xf]
    %v226 = vld [vmem:[#allocation8 + $0x18] sm:$0xf]
    %v227 = vld [vmem:[#allocation8 + $0x1c] sm:$0xf]
    %v228 = vld [vmem:[#allocation8 + $0x20] sm:$0xf]
    %v229 = vld [vmem:[#allocation8 + $0x24] sm:$0xf]
    %v230 = vld [vmem:[#allocation8 + $0x28] sm:$0xf]
    %v231 = vld [vmem:[#allocation8 + $0x2c] sm:$0xf]
    %v232 = vld [vmem:[#allocation8 + $0x30] sm:$0xf]
    %v233 = vld [vmem:[#allocation8 + $0x34] sm:$0xf]
    %v234 = vld [vmem:[#allocation8 + $0x38] sm:$0xf]
    %v235 = vld [vmem:[#allocation8 + $0x3c] sm:$0xf]
    %v236 = vld [vmem:[#allocation8 + $0x40] sm:$0xf]
    %v237 = vld [vmem:[#allocation8 + $0x44] sm:$0xf]
    %v238 = vld [vmem:[#allocation8 + $0x48] sm:$0xf]
    %v239 = vld [vmem:[#allocation8 + $0x4c] sm:$0xf]
    %v240 = vld [vmem:[#allocation8 + $0x50] sm:$0xf]
    %v241 = vld [vmem:[#allocation8 + $0x54] sm:$0xf]
    %v242 = vld [vmem:[#allocation8 + $0x58] sm:$0xf]
    %v243 = vld [vmem:[#allocation8 + $0x5c] sm:$0xf]
    %v244 = vld [vmem:[#allocation8 + $0x60] sm:$0xf]
    %v245 = vld [vmem:[#allocation8 + $0x64] sm:$0xf]
    %v246 = vld [vmem:[#allocation8 + $0x68] sm:$0xf]
    %v247 = vld [vmem:[#allocation8 + $0x6c] sm:$0xf]
    %v248 = vld [vmem:[#allocation8 + $0x70] sm:$0xf]
    %v249 = vld [vmem:[#allocation8 + $0x74] sm:$0xf]
    %v250 = vld [vmem:[#allocation8 + $0x78] sm:$0xf]
    %v251 = vld [vmem:[#allocation8 + $0x7c] sm:$0xf]
    %v284 = vunpack.c.l.b16 %v220
    %v285 = vunpack.c.l.b16 %v221
    %v286 = vunpack.c.l.b16 %v222
    %v287 = vunpack.c.l.b16 %v223
    %v288 = vunpack.c.l.b16 %v224
    %v289 = vunpack.c.l.b16 %v225
    %v290 = vunpack.c.l.b16 %v226
    %v291 = vunpack.c.l.b16 %v227
    %v292 = vunpack.c.l.b16 %v228
    %v293 = vunpack.c.l.b16 %v229
    %v294 = vunpack.c.l.b16 %v230
    %v295 = vunpack.c.l.b16 %v231
    %v296 = vunpack.c.l.b16 %v232
    %v297 = vunpack.c.l.b16 %v233
    %v298 = vunpack.c.l.b16 %v234
    %v299 = vunpack.c.l.b16 %v235
    %v300 = vunpack.c.l.b16 %v236
    %v301 = vunpack.c.l.b16 %v237
    %v302 = vunpack.c.l.b16 %v238
    %v303 = vunpack.c.l.b16 %v239
    %v304 = vunpack.c.l.b16 %v240
    %v305 = vunpack.c.l.b16 %v241
    %v306 = vunpack.c.l.b16 %v242
    %v307 = vunpack.c.l.b16 %v243
    %v308 = vunpack.c.l.b16 %v244
    %v309 = vunpack.c.l.b16 %v245
    %v310 = vunpack.c.l.b16 %v246
    %v311 = vunpack.c.l.b16 %v247
    %v312 = vunpack.c.l.b16 %v248
    %v313 = vunpack.c.l.b16 %v249
    %v314 = vunpack.c.l.b16 %v250
    %v315 = vunpack.c.l.b16 %v251
    %v316 = vpack.c.b16 %v285, %v284
    %v317 = vpack.c.b16 %v287, %v286
    %v318 = vpack.c.b16 %v289, %v288
    %v319 = vpack.c.b16 %v291, %v290
    %v320 = vpack.c.b16 %v293, %v292
    %v321 = vpack.c.b16 %v295, %v294
    %v322 = vpack.c.b16 %v297, %v296
    %v323 = vpack.c.b16 %v299, %v298
    %v324 = vpack.c.b16 %v301, %v300
    %v325 = vpack.c.b16 %v303, %v302
    %v326 = vpack.c.b16 %v305, %v304
    %v327 = vpack.c.b16 %v307, %v306
    %v328 = vpack.c.b16 %v309, %v308
    %v329 = vpack.c.b16 %v311, %v310
    %v330 = vpack.c.b16 %v313, %v312
    %v331 = vpack.c.b16 %v315, %v314
    %348 = vmatprep.subr.bf16.mxu0 0
    %349 = vmatpush1.bf16.msra.mxu0 %v316
    %350 = vmatprep.subr.bf16.mxu0 0
    %351 = vmatpush1.bf16.msra.mxu0 %v317
    %352 = vmatprep.subr.bf16.mxu0 0
    %353 = vmatpush1.bf16.msra.mxu0 %v318
    %354 = vmatprep.subr.bf16.mxu0 0
    %355 = vmatpush1.bf16.msra.mxu0 %v319
    %356 = vmatprep.subr.bf16.mxu0 0
    %357 = vmatpush1.bf16.msra.mxu0 %v320
    %358 = vmatprep.subr.bf16.mxu0 0
    %359 = vmatpush1.bf16.msra.mxu0 %v321
    %360 = vmatprep.subr.bf16.mxu0 0
    %361 = vmatpush1.bf16.msra.mxu0 %v322
    %362 = vmatprep.subr.bf16.mxu0 0
    %363 = vmatpush1.bf16.msra.mxu0 %v323
    %364 = vmatprep.subr.bf16.mxu0 0
    %365 = vmatpush1.bf16.msra.mxu0 %v324
    %366 = vmatprep.subr.bf16.mxu0 0
    %367 = vmatpush1.bf16.msra.mxu0 %v325
    %368 = vmatprep.subr.bf16.mxu0 0
    %369 = vmatpush1.bf16.msra.mxu0 %v326
    %370 = vmatprep.subr.bf16.mxu0 0
    %371 = vmatpush1.bf16.msra.mxu0 %v327
    %372 = vmatprep.subr.bf16.mxu0 0
    %373 = vmatpush1.bf16.msra.mxu0 %v328
    %374 = vmatprep.subr.bf16.mxu0 0
    %375 = vmatpush1.bf16.msra.mxu0 %v329
    %376 = vmatprep.subr.bf16.mxu0 0
    %377 = vmatpush1.bf16.msra.mxu0 %v330
    %378 = vmatprep.subr.bf16.mxu0 0
    %379 = vmatpush1.bf16.msra.mxu0 %v331
    %380 = vmatprep.mubr.bf16.mxu0 %v219
    %381 = vmatmul.mubr.bf16.gmra.mrb[0].mxu0 %v218
    %v382 = vpop.f32.mrb[0].mxu0
    %v383 = vadd.f32 0.0, %v382
    %v384 = vpop.f32.mrb[0].mxu0
    %v385 = vpop.f32.mrb[0].mxu0
    %v386 = vpop.f32.mrb[0].mxu0
    %387 = vdwg.mxu0
    %388 = vst [vmem:[#allocation10] sm:$0xff] %v383
    // Predicated region
    $region34: #{tpu_custom_call.1} parent=1 // pred_check
      _
    $region35: #{tpu_custom_call.1} parent=1 // pred_check_branch
      %390 = sbr.rel (0) target = $region37
    $region36: #{tpu_custom_call.1} parent=1 // pred_region
      %s392 = ssub.s32 128, 128
      %393 = vsyncadd [#allocation4], %s392
      %s395 = sshll.u32 [#allocation10], 4
      %s396 = int_to_ptr.vmem [resolvable:$true] %s395
      %398 = dma.vmem_to_hbm [thread:$0]  %s396, 128, %s4, [#allocation4]
    $region37: #{tpu_custom_call.1} parent=1 // pred_fallthru
      _
    // Predicated region
    $region38: #{tpu_custom_call.1} parent=1 // pred_check
      _
    $region39: #{tpu_custom_call.1} parent=1 // pred_check_branch
      %400 = sbr.rel (0) target = $region41
    $region40: #{tpu_custom_call.1} parent=1 // pred_region
      %401 = dma.done [#allocation4], 128
    $region41: #{tpu_custom_call.1} parent=1 // pred_fallthru
      _
    %402 = vsyncpa [#allocation3], 1
    %403 = vsyncpa [#allocation6], 1
    %404 = vsyncpa [#allocation9], 1
    %405 = vsyncpa [#allocation4], 1

// kernel: tpu_custom_call.1
$region0: #{tpu_custom_call.1}
  #allocation0 [shape = 'u32[]', space=smem, size = 0x4, offset = 0x4, fixed_abs, tag = 'smem constant byte address 0x4 - core index']
  #allocation1 [shape = 'u32[144,128]{1,0:T(1,128)}', space=vmem, size = 0x12000, scoped, tag = 'internal scratch']
  %s0 = inlined_call_operand.hbm [shape: f32[8,128], index: 0, kind: input, shape index: {}]
  %s1 = inlined_call_operand.hbm [shape: f32[8,128], index: 1, kind: input, shape index: {}]
  %s2 = inlined_call_operand.hbm [shape: bf16[128,256], index: 2, kind: input, shape index: {}]
  %s3 = inlined_call_operand.hbm [shape: bf16[256,128], index: 3, kind: input, shape index: {}]
  %s4 = inlined_call_operand.hbm [shape: f32[8,128], index: 4, kind: output, shape index: {}]
  %s5 = sld [smem:[#allocation0]]
  $region42: #{tpu_custom_call.1} parent=0
    _
  %s7 = ssub.s32 1, %s5
  %s8 = scalar_select 0, %s7, %s5
  $region1: #{tpu_custom_call.1} parent=0
    #allocation2 [shape = 'u8[4096]{0}', space=vmem, size = 0x1000, scoped, tag = 'input window, operand 0, single buffered']
    #allocation3 [shape = 's32[1]{0}', space=sflag, size = 0x4, scoped, tag = 'scoped memory for tpu_custom_call.1']
    #allocation4 [shape = 's32[1]{0}', space=sflag, size = 0x4, scoped, tag = 'scoped memory for tpu_custom_call.1']
    #allocation5 [shape = 'u8[4096]{0}', space=vmem, size = 0x1000, scoped, tag = 'input window, operand 1, single buffered']
    #allocation6 [shape = 's32[1]{0}', space=sflag, size = 0x4, scoped, tag = 'scoped memory for tpu_custom_call.1']
    #allocation7 [shape = 'u8[65536]{0}', space=vmem, size = 0x10000, scoped, tag = 'input window, operand 2, single buffered']
    #allocation8 [shape = 'u8[65536]{0}', space=vmem, size = 0x10000, scoped, tag = 'input window, operand 3, single buffered']
    #allocation9 [shape = 's32[1]{0}', space=sflag, size = 0x4, scoped, tag = 'scoped memory for tpu_custom_call.1']
    #allocation10 [shape = 'u8[4096]{0}', space=vmem, size = 0x1000, scoped, tag = 'output window, operand 0, single buffered']
    %9 = vsyncpa [#allocation3], 0
    %10 = vsyncpa [#allocation6], 0
    %11 = vsyncpa [#allocation9], 0
    %12 = vsyncpa [#allocation4], 0
    // Predicated region
    $region2: #{tpu_custom_call.1} parent=1 // pred_check
      _
    $region3: #{tpu_custom_call.1} parent=1 // pred_check_branch
      %14 = sbr.rel (0) target = $region5
    $region4: #{tpu_custom_call.1} parent=1 // pred_region
      %s16 = ssub.s32 128, 128
      %17 = vsyncadd [#allocation3], %s16
      %s19 = sshll.u32 [#allocation2], 4
      %s20 = int_to_ptr.vmem [resolvable:$true] %s19
      %22 = dma.hbm_to_vmem [thread:$0]  %s0, 128, %s20, [#allocation3]
    $region5: #{tpu_custom_call.1} parent=1 // pred_fallthru
      _
    // Predicated region
    $region6: #{tpu_custom_call.1} parent=1 // pred_check
      _
    $region7: #{tpu_custom_call.1} parent=1 // pred_check_branch
      %24 = sbr.rel (0) target = $region9
    $region8: #{tpu_custom_call.1} parent=1 // pred_region
      %s26 = ssub.s32 128, 128
      %27 = vsyncadd [#allocation6], %s26
      %s29 = sshll.u32 [#allocation5], 4
      %s30 = int_to_ptr.vmem [resolvable:$true] %s29
      %32 = dma.hbm_to_vmem [thread:$0]  %s1, 128, %s30, [#allocation6]
    $region9: #{tpu_custom_call.1} parent=1 // pred_fallthru
      _
    // Predicated region
    $region10: #{tpu_custom_call.1} parent=1 // pred_check
      _
    $region11: #{tpu_custom_call.1} parent=1 // pred_check_branch
      %34 = sbr.rel (0) target = $region13
    $region12: #{tpu_custom_call.1} parent=1 // pred_region
      %s36 = ssub.s32 2048, 2048
      %37 = vsyncadd [#allocation6], %s36
      %s38 = sshll.u32 [#allocation7], 4
      %s39 = int_to_ptr.vmem [resolvable:$true] %s38
      %44 = dma.hbm_to_vmem [thread:$0]  %s2, 2048, %s39, [#allocation6], 128, 128, 8
    $region13: #{tpu_custom_call.1} parent=1 // pred_fallthru
      _
    // Predicated region
    $region14: #{tpu_custom_call.1} parent=1 // pred_check
      _
    $region15: #{tpu_custom_call.1} parent=1 // pred_check_branch
      %46 = sbr.rel (0) target = $region17
    $region16: #{tpu_custom_call.1} parent=1 // pred_region
      %s48 = ssub.s32 2048, 2048
      %49 = vsyncadd [#allocation9], %s48
      %s50 = sshll.u32 [#allocation8], 4
      %s51 = int_to_ptr.vmem [resolvable:$true] %s50
      %56 = dma.hbm_to_vmem [thread:$0]  %s3, 2048, %s51, [#allocation9], 64, 64, 4
    $region17: #{tpu_custom_call.1} parent=1 // pred_fallthru
      _
    // Predicated region
    $region18: #{tpu_custom_call.1} parent=1 // pred_check
      _
    $region19: #{tpu_custom_call.1} parent=1 // pred_check_branch
      %58 = sbr.rel (0) target = $region21
    $region20: #{tpu_custom_call.1} parent=1 // pred_region
      %59 = dma.done [#allocation3], 128
    $region21: #{tpu_custom_call.1} parent=1 // pred_fallthru
      _
    // Predicated region
    $region22: #{tpu_custom_call.1} parent=1 // pred_check
      _
    $region23: #{tpu_custom_call.1} parent=1 // pred_check_branch
      %61 = sbr.rel (0) target = $region25
    $region24: #{tpu_custom_call.1} parent=1 // pred_region
      %62 = dma.done [#allocation6], 128
    $region25: #{tpu_custom_call.1} parent=1 // pred_fallthru
      _
    // Predicated region
    $region26: #{tpu_custom_call.1} parent=1 // pred_check
      _
    $region27: #{tpu_custom_call.1} parent=1 // pred_check_branch
      %64 = sbr.rel (0) target = $region29
    $region28: #{tpu_custom_call.1} parent=1 // pred_region
      %65 = dma.done [#allocation6], 2048
    $region29: #{tpu_custom_call.1} parent=1 // pred_fallthru
      _
    // Predicated region
    $region30: #{tpu_custom_call.1} parent=1 // pred_check
      _
    $region31: #{tpu_custom_call.1} parent=1 // pred_check_branch
      %67 = sbr.rel (0) target = $region33
    $region32: #{tpu_custom_call.1} parent=1 // pred_region
      %68 = dma.done [#allocation9], 2048
    $region33: #{tpu_custom_call.1} parent=1 // pred_fallthru
      _
    %v70 = vld [vmem:[#allocation2] sm:$0xff]
    %v71 = vld [vmem:[#allocation5] sm:$0xff]
    %v72 = vpack.c.bf16 %v71, %v70
    %v73 = vld [vmem:[#allocation7] sm:$0xff]
    %v74 = vld [vmem:[#allocation7 + $0x8] sm:$0xff]
    %v75 = vld [vmem:[#allocation7 + $0x10] sm:$0xff]
    %v76 = vld [vmem:[#allocation7 + $0x18] sm:$0xff]
    %v77 = vld [vmem:[#allocation7 + $0x20] sm:$0xff]
    %v78 = vld [vmem:[#allocation7 + $0x28] sm:$0xff]
    %v79 = vld [vmem:[#allocation7 + $0x30] sm:$0xff]
    %v80 = vld [vmem:[#allocation7 + $0x38] sm:$0xff]
    %v81 = vld [vmem:[#allocation7 + $0x40] sm:$0xff]
    %v82 = vld [vmem:[#allocation7 + $0x48] sm:$0xff]
    %v83 = vld [vmem:[#allocation7 + $0x50] sm:$0xff]
    %v84 = vld [vmem:[#allocation7 + $0x58] sm:$0xff]
    %v85 = vld [vmem:[#allocation7 + $0x60] sm:$0xff]
    %v86 = vld [vmem:[#allocation7 + $0x68] sm:$0xff]
    %v87 = vld [vmem:[#allocation7 + $0x70] sm:$0xff]
    %v88 = vld [vmem:[#allocation7 + $0x78] sm:$0xff]
    %v105 = vunpack.c.l.b16 %v73
    %v106 = vunpack.c.h.b16 %v73
    %v107 = vunpack.c.l.b16 %v74
    %v108 = vunpack.c.h.b16 %v74
    %v109 = vunpack.c.l.b16 %v75
    %v110 = vunpack.c.h.b16 %v75
    %v111 = vunpack.c.l.b16 %v76
    %v112 = vunpack.c.h.b16 %v76
    %v113 = vunpack.c.l.b16 %v77
    %v114 = vunpack.c.h.b16 %v77
    %v115 = vunpack.c.l.b16 %v78
    %v116 = vunpack.c.h.b16 %v78
    %v117 = vunpack.c.l.b16 %v79
    %v118 = vunpack.c.h.b16 %v79
    %v119 = vunpack.c.l.b16 %v80
    %v120 = vunpack.c.h.b16 %v80
    %v121 = vunpack.c.l.b16 %v81
    %v122 = vunpack.c.h.b16 %v81
    %v123 = vunpack.c.l.b16 %v82
    %v124 = vunpack.c.h.b16 %v82
    %v125 = vunpack.c.l.b16 %v83
    %v126 = vunpack.c.h.b16 %v83
    %v127 = vunpack.c.l.b16 %v84
    %v128 = vunpack.c.h.b16 %v84
    %v129 = vunpack.c.l.b16 %v85
    %v130 = vunpack.c.h.b16 %v85
    %v131 = vunpack.c.l.b16 %v86
    %v132 = vunpack.c.h.b16 %v86
    %v133 = vunpack.c.l.b16 %v87
    %v134 = vunpack.c.h.b16 %v87
    %v135 = vunpack.c.l.b16 %v88
    %v136 = vunpack.c.h.b16 %v88
    %v137 = vpack.c.b16 %v107, %v105
    %v138 = vpack.c.b16 %v108, %v106
    %v139 = vpack.c.b16 %v111, %v109
    %v140 = vpack.c.b16 %v112, %v110
    %v141 = vpack.c.b16 %v115, %v113
    %v142 = vpack.c.b16 %v116, %v114
    %v143 = vpack.c.b16 %v119, %v117
    %v144 = vpack.c.b16 %v120, %v118
    %v145 = vpack.c.b16 %v123, %v121
    %v146 = vpack.c.b16 %v124, %v122
    %v147 = vpack.c.b16 %v127, %v125
    %v148 = vpack.c.b16 %v128, %v126
    %v149 = vpack.c.b16 %v131, %v129
    %v150 = vpack.c.b16 %v132, %v130
    %v151 = vpack.c.b16 %v135, %v133
    %v152 = vpack.c.b16 %v136, %v134
    %169 = vmatprep.subr.bf16.mxu0 %v138
    %170 = vmatpush1.bf16.msra.mxu0 %v137
    %171 = vmatprep.subr.bf16.mxu0 %v140
    %172 = vmatpush1.bf16.msra.mxu0 %v139
    %173 = vmatprep.subr.bf16.mxu0 %v142
    %174 = vmatpush1.bf16.msra.mxu0 %v141
    %175 = vmatprep.subr.bf16.mxu0 %v144
    %176 = vmatpush1.bf16.msra.mxu0 %v143
    %177 = vmatprep.subr.bf16.mxu0 %v146
    %178 = vmatpush1.bf16.msra.mxu0 %v145
    %179 = vmatprep.subr.bf16.mxu0 %v148
    %180 = vmatpush1.bf16.msra.mxu0 %v147
    %181 = vmatprep.subr.bf16.mxu0 %v150
    %182 = vmatpush1.bf16.msra.mxu0 %v149
    %183 = vmatprep.subr.bf16.mxu0 %v152
    %184 = vmatpush1.bf16.msra.mxu0 %v151
    %185 = vmatprep.subr.bf16.mxu0 0
    %186 = vmatpush1.bf16.msra.mxu0 0
    %187 = vmatprep.subr.bf16.mxu0 0
    %188 = vmatpush1.bf16.msra.mxu0 0
    %189 = vmatprep.subr.bf16.mxu0 0
    %190 = vmatpush1.bf16.msra.mxu0 0
    %191 = vmatprep.subr.bf16.mxu0 0
    %192 = vmatpush1.bf16.msra.mxu0 0
    %193 = vmatprep.subr.bf16.mxu0 0
    %194 = vmatpush1.bf16.msra.mxu0 0
    %195 = vmatprep.subr.bf16.mxu0 0
    %196 = vmatpush1.bf16.msra.mxu0 0
    %197 = vmatprep.subr.bf16.mxu0 0
    %198 = vmatpush1.bf16.msra.mxu0 0
    %199 = vmatprep.subr.bf16.mxu0 0
    %200 = vmatpush1.bf16.msra.mxu0 0
    %201 = vmatprep.mubr.bf16.mxu0 0
    %202 = vmatmul.mubr.bf16.gmra.mrb[0].mxu0 %v72
    %v203 = vpop.f32.mrb[0].mxu0
    %v204 = vadd.f32 0.0, %v203
    %v205 = vpop.f32.mrb[0].mxu0
    %v206 = vadd.f32 0.0, %v205
    %v207 = vpop.f32.mrb[0].mxu0
    %v208 = vadd.f32 0.0, %v207
    %v209 = vpop.f32.mrb[0].mxu0
    %v210 = vadd.f32 0.0, %v209
    %211 = vdwg.mxu0
    %v212 = vmul.f32 %v204, %v208
    %v213 = vmul.f32 %v206, %v210
    %v214 = vadd.f32 %v212, %v213
    %v215 = vmul.f32 %v206, %v208
    %v216 = vmul.f32 %v204, %v210
    %v217 = vsub.f32 %v215, %v216
    %v218 = vpack.c.bf16 %v214, %v214
    %v219 = vpack.c.bf16 %v217, %v217
    %v220 = vld [vmem:[#allocation8] sm:$0xf]
    %v221 = vld [vmem:[#allocation8 + $0x4] sm:$0xf]
    %v222 = vld [vmem:[#allocation8 + $0x8] sm:$0xf]
    %v223 = vld [vmem:[#allocation8 + $0xc] sm:$0xf]
    %v224 = vld [vmem:[#allocation8 + $0x10] sm:$0xf]
    %v225 = vld [vmem:[#allocation8 + $0x14] sm:$0xf]
    %v226 = vld [vmem:[#allocation8 + $0x18] sm:$0xf]
    %v227 = vld [vmem:[#allocation8 + $0x1c] sm:$0xf]
    %v228 = vld [vmem:[#allocation8 + $0x20] sm:$0xf]
    %v229 = vld [vmem:[#allocation8 + $0x24] sm:$0xf]
    %v230 = vld [vmem:[#allocation8 + $0x28] sm:$0xf]
    %v231 = vld [vmem:[#allocation8 + $0x2c] sm:$0xf]
    %v232 = vld [vmem:[#allocation8 + $0x30] sm:$0xf]
    %v233 = vld [vmem:[#allocation8 + $0x34] sm:$0xf]
    %v234 = vld [vmem:[#allocation8 + $0x38] sm:$0xf]
    %v235 = vld [vmem:[#allocation8 + $0x3c] sm:$0xf]
    %v236 = vld [vmem:[#allocation8 + $0x40] sm:$0xf]
    %v237 = vld [vmem:[#allocation8 + $0x44] sm:$0xf]
    %v238 = vld [vmem:[#allocation8 + $0x48] sm:$0xf]
    %v239 = vld [vmem:[#allocation8 + $0x4c] sm:$0xf]
    %v240 = vld [vmem:[#allocation8 + $0x50] sm:$0xf]
    %v241 = vld [vmem:[#allocation8 + $0x54] sm:$0xf]
    %v242 = vld [vmem:[#allocation8 + $0x58] sm:$0xf]
    %v243 = vld [vmem:[#allocation8 + $0x5c] sm:$0xf]
    %v244 = vld [vmem:[#allocation8 + $0x60] sm:$0xf]
    %v245 = vld [vmem:[#allocation8 + $0x64] sm:$0xf]
    %v246 = vld [vmem:[#allocation8 + $0x68] sm:$0xf]
    %v247 = vld [vmem:[#allocation8 + $0x6c] sm:$0xf]
    %v248 = vld [vmem:[#allocation8 + $0x70] sm:$0xf]
    %v249 = vld [vmem:[#allocation8 + $0x74] sm:$0xf]
    %v250 = vld [vmem:[#allocation8 + $0x78] sm:$0xf]
    %v251 = vld [vmem:[#allocation8 + $0x7c] sm:$0xf]
    %v284 = vunpack.c.l.b16 %v220
    %v285 = vunpack.c.l.b16 %v221
    %v286 = vunpack.c.l.b16 %v222
    %v287 = vunpack.c.l.b16 %v223
    %v288 = vunpack.c.l.b16 %v224
    %v289 = vunpack.c.l.b16 %v225
    %v290 = vunpack.c.l.b16 %v226
    %v291 = vunpack.c.l.b16 %v227
    %v292 = vunpack.c.l.b16 %v228
    %v293 = vunpack.c.l.b16 %v229
    %v294 = vunpack.c.l.b16 %v230
    %v295 = vunpack.c.l.b16 %v231
    %v296 = vunpack.c.l.b16 %v232
    %v297 = vunpack.c.l.b16 %v233
    %v298 = vunpack.c.l.b16 %v234
    %v299 = vunpack.c.l.b16 %v235
    %v300 = vunpack.c.l.b16 %v236
    %v301 = vunpack.c.l.b16 %v237
    %v302 = vunpack.c.l.b16 %v238
    %v303 = vunpack.c.l.b16 %v239
    %v304 = vunpack.c.l.b16 %v240
    %v305 = vunpack.c.l.b16 %v241
    %v306 = vunpack.c.l.b16 %v242
    %v307 = vunpack.c.l.b16 %v243
    %v308 = vunpack.c.l.b16 %v244
    %v309 = vunpack.c.l.b16 %v245
    %v310 = vunpack.c.l.b16 %v246
    %v311 = vunpack.c.l.b16 %v247
    %v312 = vunpack.c.l.b16 %v248
    %v313 = vunpack.c.l.b16 %v249
    %v314 = vunpack.c.l.b16 %v250
    %v315 = vunpack.c.l.b16 %v251
    %v316 = vpack.c.b16 %v285, %v284
    %v317 = vpack.c.b16 %v287, %v286
    %v318 = vpack.c.b16 %v289, %v288
    %v319 = vpack.c.b16 %v291, %v290
    %v320 = vpack.c.b16 %v293, %v292
    %v321 = vpack.c.b16 %v295, %v294
    %v322 = vpack.c.b16 %v297, %v296
    %v323 = vpack.c.b16 %v299, %v298
    %v324 = vpack.c.b16 %v301, %v300
    %v325 = vpack.c.b16 %v303, %v302
    %v326 = vpack.c.b16 %v305, %v304
    %v327 = vpack.c.b16 %v307, %v306
    %v328 = vpack.c.b16 %v309, %v308
    %v329 = vpack.c.b16 %v311, %v310
    %v330 = vpack.c.b16 %v313, %v312
    %v331 = vpack.c.b16 %v315, %v314
    %348 = vmatprep.subr.bf16.mxu0 0
    %349 = vmatpush1.bf16.msra.mxu0 %v316
    %350 = vmatprep.subr.bf16.mxu0 0
    %351 = vmatpush1.bf16.msra.mxu0 %v317
    %352 = vmatprep.subr.bf16.mxu0 0
    %353 = vmatpush1.bf16.msra.mxu0 %v318
    %354 = vmatprep.subr.bf16.mxu0 0
    %355 = vmatpush1.bf16.msra.mxu0 %v319
    %356 = vmatprep.subr.bf16.mxu0 0
    %357 = vmatpush1.bf16.msra.mxu0 %v320
    %358 = vmatprep.subr.bf16.mxu0 0
    %359 = vmatpush1.bf16.msra.mxu0 %v321
    %360 = vmatprep.subr.bf16.mxu0 0
    %361 = vmatpush1.bf16.msra.mxu0 %v322
    %362 = vmatprep.subr.bf16.mxu0 0
    %363 = vmatpush1.bf16.msra.mxu0 %v323
    %364 = vmatprep.subr.bf16.mxu0 0
    %365 = vmatpush1.bf16.msra.mxu0 %v324
    %366 = vmatprep.subr.bf16.mxu0 0
    %367 = vmatpush1.bf16.msra.mxu0 %v325
    %368 = vmatprep.subr.bf16.mxu0 0
    %369 = vmatpush1.bf16.msra.mxu0 %v326
    %370 = vmatprep.subr.bf16.mxu0 0
    %371 = vmatpush1.bf16.msra.mxu0 %v327
    %372 = vmatprep.subr.bf16.mxu0 0
    %373 = vmatpush1.bf16.msra.mxu0 %v328
    %374 = vmatprep.subr.bf16.mxu0 0
    %375 = vmatpush1.bf16.msra.mxu0 %v329
    %376 = vmatprep.subr.bf16.mxu0 0
    %377 = vmatpush1.bf16.msra.mxu0 %v330
    %378 = vmatprep.subr.bf16.mxu0 0
    %379 = vmatpush1.bf16.msra.mxu0 %v331
    %380 = vmatprep.mubr.bf16.mxu0 %v219
    %381 = vmatmul.mubr.bf16.gmra.mrb[0].mxu0 %v218
    %v382 = vpop.f32.mrb[0].mxu0
    %v383 = vadd.f32 0.0, %v382
    %v384 = vpop.f32.mrb[0].mxu0
    %v385 = vpop.f32.mrb[0].mxu0
    %v386 = vpop.f32.mrb[0].mxu0
    %387 = vdwg.mxu0
    %388 = vst [vmem:[#allocation10] sm:$0xff] %v383
    // Predicated region
    $region34: #{tpu_custom_call.1} parent=1 // pred_check
      _
    $region35: #{tpu_custom_call.1} parent=1 // pred_check_branch
      %390 = sbr.rel (0) target = $region37
    $region36: #{tpu_custom_call.1} parent=1 // pred_region
      %s392 = ssub.s32 128, 128
      %393 = vsyncadd [#allocation4], %s392
      %s395 = sshll.u32 [#allocation10], 4
      %s396 = int_to_ptr.vmem [resolvable:$true] %s395
      %398 = dma.vmem_to_hbm [thread:$0]  %s396, 128, %s4, [#allocation4]
    $region37: #{tpu_custom_call.1} parent=1 // pred_fallthru
      _
    // Predicated region
    $region38: #{tpu_custom_call.1} parent=1 // pred_check
      _
    $region39: #{tpu_custom_call.1} parent=1 // pred_check_branch
      %400 = sbr.rel (0) target = $region41
    $region40: #{tpu_custom_call.1} parent=1 // pred_region
      %401 = dma.done [#allocation4], 128
    $region41: #{tpu_custom_call.1} parent=1 // pred_fallthru
      _
    %402 = vsyncpa [#allocation3], 1
    %403 = vsyncpa [#allocation6], 1
    %404 = vsyncpa [#allocation9], 1
    %405 = vsyncpa [#allocation4], 1

</llo_original>
